<compile_context>
chip_gen: v6e
topology: v6e:2x2x1
jax: 0.10.0
libtpu: 0.0.40
codegen_flags: <defaults>
</compile_context>

<pallas_src>
import functools

import jax
import jax.numpy as jnp
from jax.experimental import pallas as pl
from jax.experimental.pallas import tpu as pltpu


_TARGET_BLOCK_BYTES = 4 * 1024 * 1024     # ~4 MiB block, any dtype
_VMEM_LIMIT_BYTES = 48 * 1024 * 1024      # leaves headroom inside v7x's 64 MiB
_MIN_SPLIT_BLOCK_BYTES = 1 * 1024 * 1024  # only force >=2 grid steps if each >=1 MiB


def _swish_math(x):
    # sigmoid(x) = 0.5 * (tanh(0.5 * x) + 1): one EUP op, no VPU divide.
    return x * (0.5 * (jnp.tanh(0.5 * x) + 1.0))


def _swish_kernel(x_ref, o_ref, *, compute_dtype):
    x = x_ref[...].astype(compute_dtype)
    o_ref[...] = _swish_math(x).astype(o_ref.dtype)


def _compute_dtype_for(dtype):
    dtype = jnp.dtype(dtype)
    if dtype == jnp.dtype(jnp.float32):
        return jnp.float32
    if dtype == jnp.dtype(jnp.bfloat16):
        # bf16 VPU/EUP exist on v6e / v7x; v5e and older must compute in f32.
        try:
            kind = jax.devices()[0].device_kind.lower()
        except Exception:
            return jnp.float32
        if any(g in kind for g in ("v2", "v3", "v4", "v5")):
            return jnp.float32
        return jnp.bfloat16
    # f16 / f64 / integer dtypes: compute in f32, cast back.
    return jnp.float32


def _swish_2d(x2d, *, compute_dtype, block_rows):
    rows, lanes = x2d.shape
    n = rows * lanes
    itemsize = jnp.dtype(x2d.dtype).itemsize
    cost = pl.CostEstimate(
        flops=4 * n,
        transcendentals=n,
        bytes_accessed=2 * n * itemsize,
    )
    kernel = functools.partial(_swish_kernel, compute_dtype=compute_dtype)
    return pl.pallas_call(
        kernel,
        out_shape=jax.ShapeDtypeStruct((rows, lanes), x2d.dtype),
        grid_spec=pltpu.PrefetchScalarGridSpec(
            num_scalar_prefetch=0,
            grid=(pl.cdiv(rows, block_rows),),
            in_specs=[pl.BlockSpec((block_rows, lanes), lambda i: (i, 0))],
            out_specs=pl.BlockSpec((block_rows, lanes), lambda i: (i, 0)),
        ),
        compiler_params=pltpu.CompilerParams(
            dimension_semantics=("parallel",),   # megacore sharding on v7x
            vmem_limit_bytes=_VMEM_LIMIT_BYTES,
        ),
        cost_estimate=cost,
    )(x2d)


def swish(x):
    """Elementwise swish: x * sigmoid(x). Works for any shape."""
    orig_shape = x.shape
    dtype = x.dtype
    n = x.size
    if n == 0:
        return x

    compute_dtype = _compute_dtype_for(dtype)
    itemsize = jnp.dtype(dtype).itemsize
    x_flat = jnp.ravel(x)

    # Widest lane count in {1024, 512, 256, 128} that divides n: the common
    # case needs no tail handling and output stores stay lane-dense (>= 128).
    lanes = 1024
    while lanes > 128 and n % lanes != 0:
        lanes //= 2

    rows = n // lanes
    n_aligned = rows * lanes

    if rows == 0:
        # Tiny input (< 128 elements): not worth a kernel launch.
        return _swish_math(x_flat.astype(compute_dtype)).astype(dtype).reshape(orig_shape)

    # Sublane granularity for the row dim (8 x 32-bit; packed dtypes pack along sublanes).
    sublane = max(8, 32 // itemsize)

    # Byte-targeted block: same ~4 MiB footprint for every dtype.
    block_rows = max(sublane, _TARGET_BLOCK_BYTES // (lanes * itemsize))
    block_rows = min(block_rows, rows)

    # Megacore guard: split into >= 2 grid steps whenever each half is still >= 1 MiB.
    half_rows = (rows // 2 // sublane) * sublane
    if half_rows * lanes * itemsize >= _MIN_SPLIT_BLOCK_BYTES:
        block_rows = min(block_rows, half_rows)

    # A block smaller than the full row extent must be a sublane multiple.
    if block_rows < rows:
        block_rows = max(sublane, (block_rows // sublane) * sublane)

    head = _swish_2d(
        x_flat[:n_aligned].reshape(rows, lanes),
        compute_dtype=compute_dtype,
        block_rows=block_rows,
    ).reshape(-1)

    if n_aligned == n:
        return head.reshape(orig_shape)

    # Odd (< 128-element) tail: plain jnp on the suffix — no full-array pad /
    # trailing-slice HBM passes.
    tail = _swish_math(x_flat[n_aligned:].astype(compute_dtype)).astype(dtype)
    return jnp.concatenate([head, tail]).reshape(orig_shape)


if __name__ == "__main__":
    key = jax.random.PRNGKey(0)
    swish_jit = jax.jit(swish)

    # Small NCHW-shaped input consistent with a conv-net activation (aligned path).
    x = jax.random.normal(key, (2, 4, 16, 16), dtype=jnp.float32)
    out = swish_jit(x)
    jax.block_until_ready(out)
    ref = x * jax.nn.sigmoid(x)
    assert out.shape == x.shape and out.dtype == x.dtype
    assert jnp.max(jnp.abs(out - ref)) < 1e-5

    # Non-lane-aligned size exercises the prefix-kernel + jnp-tail path.
    x2 = jax.random.normal(jax.random.PRNGKey(1), (3, 5, 7, 11), dtype=jnp.float32)
    out2 = swish_jit(x2)
    jax.block_until_ready(out2)
    ref2 = x2 * jax.nn.sigmoid(x2)
    assert out2.shape == x2.shape and out2.dtype == x2.dtype
    assert jnp.max(jnp.abs(out2 - ref2)) < 1e-5

    print("KERNEL_OK")
</pallas_src>

<mosaic_0001>
module attributes {stable_mosaic.version = 11 : i64} {
  func.func @_swish_kernel(%arg0: i32, %arg1: memref<2x1024xf32, #tpu.memory_space<vmem>>, %arg2: memref<2x1024xf32, #tpu.memory_space<vmem>>) attributes {dimension_semantics = [#tpu.dimension_semantics<parallel>], iteration_bounds = array<i64: 1>, scalar_prefetch = 0 : i64, scratch_operands = 0 : i64, tpu.core_type = #tpu.core_type<tc>, window_params = [{transform_indices = @transform_0, window_bounds = array<i64: 2, 1024>}, {transform_indices = @transform_1, window_bounds = array<i64: 2, 1024>}]} {
    %c0 = arith.constant 0 : index
    %c0_0 = arith.constant 0 : index
    %0 = vector.load %arg1[%c0, %c0_0] : memref<2x1024xf32, #tpu.memory_space<vmem>>, vector<2x1024xf32>
    %cst = arith.constant 5.000000e-01 : f32
    %1 = vector.broadcast %cst : f32 to vector<2x1024xf32>
    %2 = arith.mulf %1, %0 : vector<2x1024xf32>
    %3 = math.tanh %2 : vector<2x1024xf32>
    %cst_1 = arith.constant 1.000000e+00 : f32
    %4 = vector.broadcast %cst_1 : f32 to vector<2x1024xf32>
    %5 = arith.addf %3, %4 : vector<2x1024xf32>
    %cst_2 = arith.constant 5.000000e-01 : f32
    %6 = vector.broadcast %cst_2 : f32 to vector<2x1024xf32>
    %7 = arith.mulf %6, %5 : vector<2x1024xf32>
    %8 = arith.mulf %0, %7 : vector<2x1024xf32>
    %c0_3 = arith.constant 0 : index
    %c0_4 = arith.constant 0 : index
    %9 = vector.load %arg2[%c0_3, %c0_4] : memref<2x1024xf32, #tpu.memory_space<vmem>>, vector<2x1024xf32>
    tpu.vector_store %arg2[%c0_3, %c0_4], %8 {strides = array<i32>} : memref<2x1024xf32, #tpu.memory_space<vmem>>, vector<2x1024xf32>,
    return
  }
  func.func @transform_0(%arg0: i32) -> (i32, i32) {
    %c0_i32 = arith.constant 0 : i32
    %c0_i32_0 = arith.constant 0 : i32
    return %arg0, %c0_i32 : i32, i32
  }
  func.func @transform_1(%arg0: i32) -> (i32, i32) {
    %c0_i32 = arith.constant 0 : i32
    %c0_i32_0 = arith.constant 0 : i32
    return %arg0, %c0_i32 : i32, i32
  }
}

</mosaic_0001>

<llo_original>
// kernel: swish.1
$region0: #{swish.1}
  #allocation0 [shape = 'u32[]', space=smem, size = 0x4, offset = 0x4, fixed_abs, tag = 'smem constant byte address 0x4 - core index']
  #allocation1 [shape = 'u32[144,128]{1,0:T(1,128)}', space=vmem, size = 0x12000, scoped, tag = 'internal scratch']
  %s0 = inlined_call_operand.vmem [shape: f32[2,1024], index: 0, kind: input, shape index: {}]
  %s1 = inlined_call_operand.vmem [shape: f32[2,1024], index: 1, kind: output, shape index: {}]
  %s2 = sld [smem:[#allocation0]]
  $region14: #{swish.1} parent=0
    _
  %s4 = ssub.s32 1, %s2
  %s5 = scalar_select 0, %s4, %s2
  // Predicated region
  $region2: #{swish.1} parent=0 // pred_check
    _
  $region3: #{swish.1} parent=0 // pred_check_branch
    %7 = sbr.rel (0) target = $region5
  $region4: #{swish.1} parent=0 // pred_region
    _
  $region5: #{swish.1} parent=0 // pred_fallthru
    _
  %v8 = vld [vmem:[%s0] sm:$0xff]
  %v9 = vld [vmem:[%s0 + $0x8] sm:$0xff]
  %v10 = vmul.f32 %v8, 0.5
  %v11 = vmul.f32 %v9, 0.5
  %v12 = vtanh.pop %v10
  %v13 = vtanh.pop %v11
  %v14 = vadd.f32 %v12, 1.0
  %v15 = vadd.f32 %v13, 1.0
  %v16 = vmul.f32 %v14, 0.5
  %v17 = vmul.f32 %v15, 0.5
  %v18 = vmul.f32 %v8, %v16
  %v19 = vmul.f32 %v9, %v17
  %20 = vst [vmem:[%s1] sm:$0xff] %v18
  %21 = vst [vmem:[%s1 + $0x8] sm:$0xff] %v19
  // Predicated region
  $region6: #{swish.1} parent=0 // pred_check
    _
  $region7: #{swish.1} parent=0 // pred_check_branch
    %23 = sbr.rel (0) target = $region9
  $region8: #{swish.1} parent=0 // pred_region
    _
  $region9: #{swish.1} parent=0 // pred_fallthru
    _
  // Predicated region
  $region10: #{swish.1} parent=0 // pred_check
    _
  $region11: #{swish.1} parent=0 // pred_check_branch
    %25 = sbr.rel (0) target = $region13
  $region12: #{swish.1} parent=0 // pred_region
    _
  $region13: #{swish.1} parent=0 // pred_fallthru
    _

</llo_original>
